<compile_context>
chip_gen: v7x
topology: tpu7x:2x2x1
jax: 0.10.0
libtpu: 0.0.40
codegen_flags: <defaults>
</compile_context>

<pallas_src>
import jax
import jax.numpy as jnp
from jax.experimental import pallas as pl
from jax.experimental.pallas import tpu as pltpu


def _round_up(x: int, m: int) -> int:
    return (x + m - 1) // m * m


def _cdiv(a: int, b: int) -> int:
    return (a + b - 1) // b


def _linear_kernel(x_ref, w_ref, b_ref, o_ref):
    # Single K block: [TM, K] @ [K, TN] on the MXU with f32 accumulation,
    # bias add on the VPU, direct store (no scratch round-trip).
    acc = jnp.dot(x_ref[...], w_ref[...], preferred_element_type=jnp.float32)
    o_ref[...] = (acc + b_ref[...]).astype(o_ref.dtype)


def _linear_kernel_ktiled(x_ref, w_ref, b_ref, o_ref, acc_ref):
    # K-tiled: accumulate partial products in an f32 VMEM scratch, write once.
    k = pl.program_id(2)

    @pl.when(k == 0)
    def _():
        acc_ref[...] = jnp.zeros_like(acc_ref)

    acc_ref[...] += jnp.dot(x_ref[...], w_ref[...],
                            preferred_element_type=jnp.float32)

    @pl.when(k == pl.num_programs(2) - 1)
    def _():
        o_ref[...] = (acc_ref[...] + b_ref[...]).astype(o_ref.dtype)


def seq_to_ann_linear(x_seq, weight, bias, *, compute_dtype=None,
                      tm_max=1024, tn_max=256,
                      vmem_budget_bytes=40 * 1024 * 1024):
    """SeqToANNContainer(nn.Linear(C_in, C_out)).forward equivalent.

    x_seq:  [T, B, C_in]
    weight: [C_in, C_out]   (transposed vs torch's [C_out, C_in])
    bias:   [C_out]
    returns [T, B, C_out]  (in x_seq's original dtype)
    """
    T, B, C_in = x_seq.shape
    C_out = weight.shape[1]
    N = T * B
    out_dtype = x_seq.dtype

    # Optional bf16 feed: halves HBM bytes for the dominant operands and runs
    # the MXU at native bf16 rate; accumulation stays f32 inside the kernel.
    if compute_dtype is not None:
        x_seq = x_seq.astype(compute_dtype)
        weight = weight.astype(compute_dtype)

    # flatten(0, 1).contiguous()
    x_flat = x_seq.reshape(N, C_in)

    in_itemsize = jnp.dtype(x_flat.dtype).itemsize
    out_itemsize = jnp.dtype(out_dtype).itemsize

    # ---- Tile selection -------------------------------------------------
    # Output lane tile: full 256-wide MXU on v6e/v7x when C_out allows.
    lane_q = 256 if C_out >= 256 else 128
    TN = min(_round_up(tn_max, lane_q), _round_up(C_out, lane_q))

    # Row tile: make the last row tile nearly full instead of padding N up to
    # a multiple of tm_max.
    N8 = _round_up(N, 8)
    ni = max(1, _cdiv(N8, tm_max))
    TM = _round_up(_cdiv(N8, ni), 8)

    C_in_128 = _round_up(C_in, 128)

    def vmem_bytes(tm, tk, tn):
        return (2 * (tm * tk + tk * tn) * in_itemsize   # x + w (double-buffered)
                + 2 * tm * tn * out_itemsize            # output (double-buffered)
                + tm * tn * 4                           # f32 accumulator
                + 2 * tn * 4)                           # bias

    # K tile: shrink K (third grid axis) until the working set fits the VMEM
    # budget (v7x has only 64 MiB physical); shrink TM only as a last resort.
    TK = C_in_128
    nk_guess = 1
    while vmem_bytes(TM, TK, TN) > vmem_budget_bytes and TK > 128:
        nk_guess += 1
        TK = _round_up(_cdiv(C_in_128, nk_guess), 128)
    while vmem_bytes(TM, TK, TN) > vmem_budget_bytes and TM > 8:
        TM = max(8, _round_up(TM // 2, 8))

    ni = _cdiv(N8, TM)
    N_p = ni * TM
    nk = _cdiv(C_in_128, TK)
    K_p = nk * TK
    nj = _cdiv(C_out, TN)
    C_out_p = nj * TN

    # ---- Padding (zero-padding rows / K / cols is exact for the matmul) ---
    if (N_p, K_p) != (N, C_in):
        x_p = jnp.pad(x_flat, ((0, N_p - N), (0, K_p - C_in)))
    else:
        x_p = x_flat
    if (K_p, C_out_p) != (C_in, C_out):
        w_p = jnp.pad(weight, ((0, K_p - C_in), (0, C_out_p - C_out)))
    else:
        w_p = weight
    b_p = jnp.pad(bias.reshape(1, C_out).astype(jnp.float32),
                  ((0, 0), (0, C_out_p - C_out)))

    x_bytes = N_p * K_p * in_itemsize
    w_bytes = K_p * C_out_p * in_itemsize

    # ---- Loop order: keep the SMALLER operand's refetch cost --------------
    # Row axis outer  -> x read once (when nk == 1), w re-read ni times.
    # Col axis outer  -> w read once (when nk == 1), x re-read nj times.
    row_outer = (ni - 1) * w_bytes <= (nj - 1) * x_bytes

    if row_outer:
        grid = (ni, nj, nk)
        x_map = lambda i, j, k: (i, k)
        w_map = lambda i, j, k: (k, j)
        b_map = lambda i, j, k: (0, j)
        o_map = lambda i, j, k: (i, j)
    else:
        grid = (nj, ni, nk)
        x_map = lambda j, i, k: (i, k)
        w_map = lambda j, i, k: (k, j)
        b_map = lambda j, i, k: (0, j)
        o_map = lambda j, i, k: (i, j)

    # Honest re-stream factors for the scheduler hint.
    x_reads = 1 if (nk == 1 and row_outer) else nj
    w_reads = 1 if (nk == 1 and not row_outer) else ni
    cost = pl.CostEstimate(
        flops=2 * N_p * K_p * C_out_p,
        transcendentals=0,
        bytes_accessed=(x_reads * x_bytes
                        + w_reads * w_bytes
                        + N_p * C_out_p * out_itemsize
                        + C_out_p * 4),
    )

    est = vmem_bytes(TM, TK, TN)
    # Raise the scoped-VMEM limit above the small defaults (16 MiB v5e /
    # 32 MiB v6e/v7x) but stay under v7x's 64 MiB physical ceiling.
    vmem_limit = int(min(max(est + est // 2 + (2 << 20), 32 << 20), 60 << 20))

    if nk == 1:
        kernel = _linear_kernel
        scratch = ()
    else:
        kernel = _linear_kernel_ktiled
        scratch = [pltpu.VMEM((TM, TN), jnp.float32)]

    y_p = pl.pallas_call(
        kernel,
        out_shape=jax.ShapeDtypeStruct((N_p, C_out_p), out_dtype),
        grid=grid,
        in_specs=[
            pl.BlockSpec((TM, TK), x_map),
            pl.BlockSpec((TK, TN), w_map),
            pl.BlockSpec((1, TN), b_map),
        ],
        out_specs=pl.BlockSpec((TM, TN), o_map),
        scratch_shapes=scratch,
        compiler_params=pltpu.CompilerParams(
            dimension_semantics=("parallel", "parallel", "arbitrary"),
            vmem_limit_bytes=vmem_limit,
        ),
        cost_estimate=cost,
    )(x_p, w_p, b_p)

    # Strip padding, then y_seq.view([T, B, *y.shape[1:]]).
    return y_p[:N, :C_out].reshape(T, B, C_out)


if __name__ == "__main__":
    # Small shapes: seq T=8, batch B=2, hidden C_in=32 -> C_out=32.
    T, B, C_in, C_out = 8, 2, 32, 32

    key = jax.random.PRNGKey(0)
    kx, kw, kb = jax.random.split(key, 3)

    x_seq = jax.random.normal(kx, (T, B, C_in), dtype=jnp.float32)

    # Deterministic "PyTorch-like" init: uniform(-1/sqrt(fan_in), 1/sqrt(fan_in)).
    bound = 1.0 / jnp.sqrt(jnp.float32(C_in))
    weight = jax.random.uniform(kw, (C_in, C_out), jnp.float32, -bound, bound)
    bias = jax.random.uniform(kb, (C_out,), jnp.float32, -bound, bound)

    # Pure-JAX reference of the same forward pass.
    y_ref = (x_seq.reshape(T * B, C_in) @ weight + bias).reshape(T, B, C_out)

    # f32 path (bit-matches the torch module semantics).
    y = jax.block_until_ready(seq_to_ann_linear(x_seq, weight, bias))
    assert y.shape == (T, B, C_out), y.shape
    assert jnp.allclose(y, y_ref, atol=1e-5, rtol=1e-5), "f32 mismatch vs reference"

    # bf16-feed path (production default on v5e/v6e/v7x): f32 accumulation,
    # looser tolerance for bf16 input rounding only.
    y_bf16 = jax.block_until_ready(
        seq_to_ann_linear(x_seq, weight, bias, compute_dtype=jnp.bfloat16))
    assert y_bf16.shape == (T, B, C_out), y_bf16.shape
    assert jnp.allclose(y_bf16, y_ref, atol=5e-2, rtol=5e-2), "bf16 mismatch vs reference"

    print("KERNEL_OK")
</pallas_src>

<mosaic_0001>
module attributes {stable_mosaic.version = 11 : i64} {
  func.func @_linear_kernel(%arg0: i32, %arg1: i32, %arg2: i32, %arg3: memref<16x128xf32, #tpu.memory_space<vmem>>, %arg4: memref<128x128xf32, #tpu.memory_space<vmem>>, %arg5: memref<1x128xf32, #tpu.memory_space<vmem>>, %arg6: memref<16x128xf32, #tpu.memory_space<vmem>>) attributes {dimension_semantics = [#tpu.dimension_semantics<parallel>, #tpu.dimension_semantics<parallel>, #tpu.dimension_semantics<arbitrary>], iteration_bounds = array<i64: 1, 1, 1>, scalar_prefetch = 0 : i64, scratch_operands = 0 : i64, tpu.core_type = #tpu.core_type<tc>, window_params = [{transform_indices = @transform_0, window_bounds = array<i64: 16, 128>}, {transform_indices = @transform_1, window_bounds = array<i64: 128, 128>}, {transform_indices = @transform_2, window_bounds = array<i64: 1, 128>}, {transform_indices = @transform_3, window_bounds = array<i64: 16, 128>}]} {
    %c0 = arith.constant 0 : index
    %c0_0 = arith.constant 0 : index
    %0 = vector.load %arg3[%c0, %c0_0] : memref<16x128xf32, #tpu.memory_space<vmem>>, vector<16x128xf32>
    %c0_1 = arith.constant 0 : index
    %c0_2 = arith.constant 0 : index
    %1 = vector.load %arg4[%c0_1, %c0_2] : memref<128x128xf32, #tpu.memory_space<vmem>>, vector<128x128xf32>
    %cst = arith.constant dense<0.000000e+00> : vector<16x128xf32>
    %2 = tpu.matmul %0, %1, %cst {dimension_numbers = #tpu.dot_dimension_numbers<[1], [0], [0], [1], [0, 0, 1, 1], [], []>} : vector<16x128xf32>, vector<128x128xf32>, vector<16x128xf32> -> vector<16x128xf32>
    %c0_3 = arith.constant 0 : index
    %c0_4 = arith.constant 0 : index
    %3 = vector.load %arg5[%c0_3, %c0_4] : memref<1x128xf32, #tpu.memory_space<vmem>>, vector<1x128xf32>
    %4 = vector.broadcast %3 : vector<1x128xf32> to vector<16x128xf32>
    %5 = arith.addf %2, %4 : vector<16x128xf32>
    %c0_5 = arith.constant 0 : index
    %c0_6 = arith.constant 0 : index
    %6 = vector.load %arg6[%c0_5, %c0_6] : memref<16x128xf32, #tpu.memory_space<vmem>>, vector<16x128xf32>
    tpu.vector_store %arg6[%c0_5, %c0_6], %5 {strides = array<i32>} : memref<16x128xf32, #tpu.memory_space<vmem>>, vector<16x128xf32>,
    return
  }
  func.func @transform_0(%arg0: i32, %arg1: i32, %arg2: i32) -> (i32, i32) {
    %c0_i32 = arith.constant 0 : i32
    return %arg0, %arg2 : i32, i32
  }
  func.func @transform_1(%arg0: i32, %arg1: i32, %arg2: i32) -> (i32, i32) {
    %c0_i32 = arith.constant 0 : i32
    return %arg2, %arg1 : i32, i32
  }
  func.func @transform_2(%arg0: i32, %arg1: i32, %arg2: i32) -> (i32, i32) {
    %c0_i32 = arith.constant 0 : i32
    %c0_i32_0 = arith.constant 0 : i32
    return %c0_i32, %arg1 : i32, i32
  }
  func.func @transform_3(%arg0: i32, %arg1: i32, %arg2: i32) -> (i32, i32) {
    %c0_i32 = arith.constant 0 : i32
    return %arg0, %arg1 : i32, i32
  }
}

</mosaic_0001>

<llo_original>
// kernel: tpu_custom_call.1
$region0: #{tpu_custom_call.1}
  #allocation0 [shape = 'u32[]', space=smem, size = 0x4, offset = 0x4, fixed_abs, tag = 'smem constant byte address 0x4 - core index']
  #allocation1 [shape = 'u32[144,128]{1,0:T(1,128)}', space=vmem, size = 0x12000, scoped, tag = 'internal scratch']
  %s0 = inlined_call_operand.hbm [shape: f32[16,128], index: 0, kind: input, shape index: {}]
  %s1 = inlined_call_operand.hbm [shape: f32[128,128], index: 1, kind: input, shape index: {}]
  %s2 = inlined_call_operand.vmem [shape: f32[1,128], index: 2, kind: input, shape index: {}]
  %s3 = inlined_call_operand.hbm [shape: f32[16,128], index: 3, kind: output, shape index: {}]
  %s4 = sld [smem:[#allocation0]]
  $region30: #{tpu_custom_call.1} parent=0
    _
  %s6 = ssub.s32 1, %s4
  %s7 = scalar_select 0, %s6, %s4
  $region1: #{tpu_custom_call.1} parent=0
    #allocation2 [shape = 'u8[8192]{0}', space=vmem, size = 0x2000, scoped, tag = 'input window, operand 0, single buffered']
    #allocation3 [shape = 's32[1]{0}', space=sflag, size = 0x4, scoped, tag = 'scoped memory for tpu_custom_call.1']
    #allocation4 [shape = 's32[1]{0}', space=sflag, size = 0x4, scoped, tag = 'scoped memory for tpu_custom_call.1']
    #allocation5 [shape = 'u8[65536]{0}', space=vmem, size = 0x10000, scoped, tag = 'input window, operand 1, single buffered']
    #allocation6 [shape = 's32[1]{0}', space=sflag, size = 0x4, scoped, tag = 'scoped memory for tpu_custom_call.1']
    #allocation7 [shape = 'u8[8192]{0}', space=vmem, size = 0x2000, scoped, tag = 'output window, operand 0, single buffered']
    %8 = vsyncpa [#allocation3], 0
    %9 = vsyncpa [#allocation6], 0
    %10 = vsyncpa [#allocation4], 0
    // Predicated region
    $region2: #{tpu_custom_call.1} parent=1 // pred_check
      _
    $region3: #{tpu_custom_call.1} parent=1 // pred_check_branch
      %12 = sbr.rel (0) target = $region5
    $region4: #{tpu_custom_call.1} parent=1 // pred_region
      %s14 = ssub.s32 256, 256
      %15 = vsyncadd [#allocation3], %s14
      %s16 = sshll.u32 [#allocation2], 4
      %s17 = int_to_ptr.vmem [resolvable:$true] %s16
      %22 = dma.hbm_to_vmem [thread:$0]  %s0, 256, %s17, [#allocation3], 128, 128, 8
    $region5: #{tpu_custom_call.1} parent=1 // pred_fallthru
      _
    // Predicated region
    $region6: #{tpu_custom_call.1} parent=1 // pred_check
      _
    $region7: #{tpu_custom_call.1} parent=1 // pred_check_branch
      %24 = sbr.rel (0) target = $region9
    $region8: #{tpu_custom_call.1} parent=1 // pred_region
      %s26 = ssub.s32 2048, 2048
      %27 = vsyncadd [#allocation6], %s26
      %s28 = sshll.u32 [#allocation5], 4
      %s29 = int_to_ptr.vmem [resolvable:$true] %s28
      %34 = dma.hbm_to_vmem [thread:$0]  %s1, 2048, %s29, [#allocation6], 128, 128, 8
    $region9: #{tpu_custom_call.1} parent=1 // pred_fallthru
      _
    // Predicated region
    $region10: #{tpu_custom_call.1} parent=1 // pred_check
      _
    $region11: #{tpu_custom_call.1} parent=1 // pred_check_branch
      %36 = sbr.rel (0) target = $region13
    $region12: #{tpu_custom_call.1} parent=1 // pred_region
      _
    $region13: #{tpu_custom_call.1} parent=1 // pred_fallthru
      _
    // Predicated region
    $region14: #{tpu_custom_call.1} parent=1 // pred_check
      _
    $region15: #{tpu_custom_call.1} parent=1 // pred_check_branch
      %38 = sbr.rel (0) target = $region17
    $region16: #{tpu_custom_call.1} parent=1 // pred_region
      %39 = dma.done [#allocation3], 256
    $region17: #{tpu_custom_call.1} parent=1 // pred_fallthru
      _
    // Predicated region
    $region18: #{tpu_custom_call.1} parent=1 // pred_check
      _
    $region19: #{tpu_custom_call.1} parent=1 // pred_check_branch
      %41 = sbr.rel (0) target = $region21
    $region20: #{tpu_custom_call.1} parent=1 // pred_region
      %42 = dma.done [#allocation6], 2048
    $region21: #{tpu_custom_call.1} parent=1 // pred_fallthru
      _
    %v43 = vld [vmem:[#allocation2] sm:$0xff]
    %v44 = vld [vmem:[#allocation2 + $0x8] sm:$0xff]
    %v45 = vld [vmem:[#allocation5] sm:$0xff]
    %v46 = vld [vmem:[#allocation5 + $0x8] sm:$0xff]
    %v47 = vld [vmem:[#allocation5 + $0x10] sm:$0xff]
    %v48 = vld [vmem:[#allocation5 + $0x18] sm:$0xff]
    %v49 = vld [vmem:[#allocation5 + $0x20] sm:$0xff]
    %v50 = vld [vmem:[#allocation5 + $0x28] sm:$0xff]
    %v51 = vld [vmem:[#allocation5 + $0x30] sm:$0xff]
    %v52 = vld [vmem:[#allocation5 + $0x38] sm:$0xff]
    %v53 = vld [vmem:[#allocation5 + $0x40] sm:$0xff]
    %v54 = vld [vmem:[#allocation5 + $0x48] sm:$0xff]
    %v55 = vld [vmem:[#allocation5 + $0x50] sm:$0xff]
    %v56 = vld [vmem:[#allocation5 + $0x58] sm:$0xff]
    %v57 = vld [vmem:[#allocation5 + $0x60] sm:$0xff]
    %v58 = vld [vmem:[#allocation5 + $0x68] sm:$0xff]
    %v59 = vld [vmem:[#allocation5 + $0x70] sm:$0xff]
    %v60 = vld [vmem:[#allocation5 + $0x78] sm:$0xff]
    %v61 = vld [vmem:[%s2] sm:$0x1]
    %v63 = vlaneseq
    %v64 = vshrl.u32 %v63, 7
    %v65 = vsub.s32 0, %v64
    %v66 = vrot.slane %v61, %v65
    %68 = vmatprep.subr.mxu0 0.0
    %69 = vmatpush1.msra.mxu0 %v45
    %70 = vmatprep.subr.mxu0 0.0
    %71 = vmatpush1.msra.mxu0 %v46
    %72 = vmatprep.subr.mxu0 0.0
    %73 = vmatpush1.msra.mxu0 %v47
    %74 = vmatprep.subr.mxu0 0.0
    %75 = vmatpush1.msra.mxu0 %v48
    %76 = vmatprep.subr.mxu0 0.0
    %77 = vmatpush1.msra.mxu0 %v49
    %78 = vmatprep.subr.mxu0 0.0
    %79 = vmatpush1.msra.mxu0 %v50
    %80 = vmatprep.subr.mxu0 0.0
    %81 = vmatpush1.msra.mxu0 %v51
    %82 = vmatprep.subr.mxu0 0.0
    %83 = vmatpush1.msra.mxu0 %v52
    %84 = vmatprep.subr.mxu0 0.0
    %85 = vmatpush1.msra.mxu0 %v53
    %86 = vmatprep.subr.mxu0 0.0
    %87 = vmatpush1.msra.mxu0 %v54
    %88 = vmatprep.subr.mxu0 0.0
    %89 = vmatpush1.msra.mxu0 %v55
    %90 = vmatprep.subr.mxu0 0.0
    %91 = vmatpush1.msra.mxu0 %v56
    %92 = vmatprep.subr.mxu0 0.0
    %93 = vmatpush1.msra.mxu0 %v57
    %94 = vmatprep.subr.mxu0 0.0
    %95 = vmatpush1.msra.mxu0 %v58
    %96 = vmatprep.subr.mxu0 0.0
    %97 = vmatpush1.msra.mxu0 %v59
    %98 = vmatprep.subr.mxu0 0.0
    %99 = vmatpush1.msra.mxu0 %v60
    %100 = vmatprep.subr.mxu0 0.0
    %101 = vmatpush1.msra.mxu0 0.0
    %102 = vmatprep.subr.mxu0 0.0
    %103 = vmatpush1.msra.mxu0 0.0
    %104 = vmatprep.subr.mxu0 0.0
    %105 = vmatpush1.msra.mxu0 0.0
    %106 = vmatprep.subr.mxu0 0.0
    %107 = vmatpush1.msra.mxu0 0.0
    %108 = vmatprep.subr.mxu0 0.0
    %109 = vmatpush1.msra.mxu0 0.0
    %110 = vmatprep.subr.mxu0 0.0
    %111 = vmatpush1.msra.mxu0 0.0
    %112 = vmatprep.subr.mxu0 0.0
    %113 = vmatpush1.msra.mxu0 0.0
    %114 = vmatprep.subr.mxu0 0.0
    %115 = vmatpush1.msra.mxu0 0.0
    %116 = vmatprep.subr.mxu0 0.0
    %117 = vmatpush1.msra.mxu0 0.0
    %118 = vmatprep.subr.mxu0 0.0
    %119 = vmatpush1.msra.mxu0 0.0
    %120 = vmatprep.subr.mxu0 0.0
    %121 = vmatpush1.msra.mxu0 0.0
    %122 = vmatprep.subr.mxu0 0.0
    %123 = vmatpush1.msra.mxu0 0.0
    %124 = vmatprep.subr.mxu0 0.0
    %125 = vmatpush1.msra.mxu0 0.0
    %126 = vmatprep.subr.mxu0 0.0
    %127 = vmatpush1.msra.mxu0 0.0
    %128 = vmatprep.subr.mxu0 0.0
    %129 = vmatpush1.msra.mxu0 0.0
    %130 = vmatprep.subr.mxu0 0.0
    %131 = vmatpush1.msra.mxu0 0.0
    %132 = vmatprep.mubr.f32.mxu0 0.0
    %133 = vmatmul.mubr.f32.gmra.mrb[0].mxu0 %v43
    %v134 = vpop.f32.mrb[0].mxu0
    %v135 = vadd.f32 %v66, %v134
    %v136 = vpop.f32.mrb[0].mxu0
    %137 = vmatprep.mubr.f32.mxu0 0.0
    %138 = vmatmul.mubr.f32.gmra.mrb[0].mxu0 %v44
    %v139 = vpop.f32.mrb[0].mxu0
    %v140 = vadd.f32 %v66, %v139
    %v141 = vpop.f32.mrb[0].mxu0
    %142 = vdwg.mxu0
    %143 = vst [vmem:[#allocation7] sm:$0xff] %v135
    %144 = vst [vmem:[#allocation7 + $0x8] sm:$0xff] %v140
    // Predicated region
    $region22: #{tpu_custom_call.1} parent=1 // pred_check
      _
    $region23: #{tpu_custom_call.1} parent=1 // pred_check_branch
      %146 = sbr.rel (0) target = $region25
    $region24: #{tpu_custom_call.1} parent=1 // pred_region
      %s148 = ssub.s32 256, 256
      %149 = vsyncadd [#allocation4], %s148
      %s150 = sshll.u32 [#allocation7], 4
      %s151 = int_to_ptr.vmem [resolvable:$true] %s150
      %156 = dma.vmem_to_hbm [thread:$0]  %s151, 256, %s3, [#allocation4], 128, 128, 8
    $region25: #{tpu_custom_call.1} parent=1 // pred_fallthru
      _
    // Predicated region
    $region26: #{tpu_custom_call.1} parent=1 // pred_check
      _
    $region27: #{tpu_custom_call.1} parent=1 // pred_check_branch
      %158 = sbr.rel (0) target = $region29
    $region28: #{tpu_custom_call.1} parent=1 // pred_region
      %159 = dma.done [#allocation4], 256
    $region29: #{tpu_custom_call.1} parent=1 // pred_fallthru
      _
    %160 = vsyncpa [#allocation3], 1
    %161 = vsyncpa [#allocation6], 1
    %162 = vsyncpa [#allocation4], 1

</llo_original>
